<compile_context>
chip_gen: v7x
topology: tpu7x:2x2x1
jax: 0.10.0
libtpu: 0.0.40
codegen_flags: <defaults>
</compile_context>

<pallas_src>
import functools

import jax
import jax.numpy as jnp
from jax.experimental import pallas as pl
from jax.experimental.pallas import tpu as pltpu


# ----------------------------------------------------------------------------- helpers
def _round_up(x: int, m: int) -> int:
    return ((x + m - 1) // m) * m


def _cdiv(a: int, b: int) -> int:
    return -(-a // b)


def _vmem_capacity_bytes() -> int:
    """Physical VMEM of the local chip (128 MiB v5e/v6e, 64 MiB v7x)."""
    try:
        return int(pltpu.get_tpu_info().vmem_capacity_bytes)
    except Exception:
        return 64 * 1024 * 1024  # conservative (v7x-sized) fallback


def _has_bf16_vpu() -> bool:
    """v6e / v7x have a bf16 VPU; v2-v5 do not (keep f32 elementwise there)."""
    try:
        kind = jax.devices()[0].device_kind.lower()
    except Exception:
        return False
    return not any(tag in kind for tag in ("v2", "v3", "v4", "v5"))


def _fixed_vmem_bytes(h_pad: int, o: int, w_item: int, weight_bufs: int = 1) -> int:
    """TB-independent resident footprint: W1, W2 and both biases."""
    w = (h_pad * 2 * h_pad + 2 * h_pad * o) * w_item * weight_bufs
    b = (2 * h_pad + o) * 4 * weight_bufs
    return w + b


def _per_row_vmem_bytes(h_pad: int, o: int, x_item: int, w_item: int,
                        out_item: int, mxu_is_f32: bool) -> int:
    """VMEM bytes per batch row of the tile (pipelined x/q tiles + intermediates)."""
    b = 2 * h_pad * x_item          # double-buffered x tile
    b += 2 * o * out_item           # double-buffered q tile
    b += 2 * h_pad * 4              # f32 layer-1 accumulator
    b += o * 4                      # f32 q before the store cast
    if not mxu_is_f32:
        b += 2 * h_pad * w_item     # h in MXU dtype
        b += h_pad * w_item         # x cast to MXU dtype
    return b


def _choose_tiling(batch: int, per_row_bytes: int, fixed_bytes: int,
                   budget: int, max_batch_tile: int):
    """Pick (TB, B_pad, n_steps): TB multiple of 8, near-divisor of B, VMEM-fitting,
    and >=2 grid steps when the batch is large enough (v7x megacore + pipelining)."""
    if fixed_bytes >= budget:
        raise ValueError(
            "Resident W1/W2 do not fit the VMEM budget "
            f"({fixed_bytes} B vs budget {budget} B). Use bf16/fp8 weights or K-tile the "
            "reduction dimension."  # see TODO(synk) above
        )
    avail = budget - fixed_bytes
    tb_cap = max(8, min(max_batch_tile, avail // per_row_bytes) // 8 * 8)
    min_steps = 2 if batch >= 128 else 1
    steps = max(min_steps, _cdiv(batch, tb_cap))
    tb = _round_up(_cdiv(batch, steps), 8)
    steps = _cdiv(batch, tb)
    b_pad = steps * tb
    return tb, b_pad, steps


# ----------------------------------------------------------------------------- kernel
def dueling_head_kernel(x_ref, w1_ref, b1_ref, w2_ref, b2_ref, q_ref, *, lp_elementwise):
    mxu_dtype = w1_ref.dtype
    low_precision = lp_elementwise and (mxu_dtype != jnp.float32)

    # Fused layer 1: [h_a | h_v] = ReLU(x @ [Wa1 | Wv1] + [ba1 | bv1])   (TB, 2*H_pad)
    h32 = jnp.dot(x_ref[...].astype(mxu_dtype), w1_ref[...],
                  preferred_element_type=jnp.float32)
    if low_precision:
        # bf16 VPU available (v6e/v7x): one cast total, halves the live h footprint.
        h = jnp.maximum(h32.astype(mxu_dtype) + b1_ref[...].astype(mxu_dtype), 0)
    else:
        # f32 elementwise path (v5e has no bf16 VPU); cast only for the second matmul.
        h = jnp.maximum(h32 + b1_ref[...], 0.0).astype(mxu_dtype)

    # Fused layer 2: q = h @ W2 + b2.  Dueling mean-subtraction and the value column are
    # folded into W2/b2 host-side (exact, see fuse_params), so no epilogue is needed.
    q = jnp.dot(h, w2_ref[...], preferred_element_type=jnp.float32) + b2_ref[...]
    q_ref[...] = q.astype(q_ref.dtype)


# ----------------------------------------------------------------------------- params
def fuse_params(raw, hidden_size, output_size, mxu_dtype=jnp.bfloat16):
    """Build the fused / padded kernel weights from the per-branch parameters.

    raw weights are in math layout (in_features, out_features); biases are 1-D.
    Note: with bf16 MXU operands, centering Wa2 / replicating wv2 happens *before* the
    cast, so only the f32 path matches the literal PyTorch ordering bit-for-bit.
    """
    H, O = hidden_size, output_size
    H_pad = _round_up(H, 128)

    # --- layer 1: W1 = [Wa1 | Wv1], b1 = [ba1 | bv1], zero-padded to lane multiples ---
    w1 = jnp.zeros((H_pad, 2 * H_pad), jnp.float32)
    w1 = w1.at[:H, :H].set(raw["wa1"]).at[:H, H_pad:H_pad + H].set(raw["wv1"])
    b1 = jnp.zeros((1, 2 * H_pad), jnp.float32)
    b1 = b1.at[0, :H].set(raw["ba1"]).at[0, H_pad:H_pad + H].set(raw["bv1"])

    # --- layer 2: fold dueling aggregation into the weights (exact) ------------------
    #   a - mean_j(a) = h_a @ (Wa2 - rowmean(Wa2)) + (ba2 - mean(ba2))
    #   + v           = h_v @ wv2 (same for every output column) + bv2
    wa2_c = raw["wa2"] - raw["wa2"].mean(axis=1, keepdims=True)        # (H, O)
    ba2_c = raw["ba2"] - raw["ba2"].mean()                             # (O,)
    w2 = jnp.zeros((2 * H_pad, O), jnp.float32)
    w2 = w2.at[:H, :].set(wa2_c)
    w2 = w2.at[H_pad:H_pad + H, :].set(jnp.tile(raw["wv2"], (1, O)))   # wv2 is (H, 1)
    b2 = (ba2_c + raw["bv2"][0]).reshape(1, O).astype(jnp.float32)

    return dict(
        w1=w1.astype(mxu_dtype), b1=b1,      # biases stored f32
        w2=w2.astype(mxu_dtype), b2=b2,
        hidden_size=H, output_size=O, H_pad=H_pad,
    )


# ----------------------------------------------------------------------------- wrapper
def dueling_head_forward(x, fused, *, out_dtype=None, max_batch_tile=1024,
                         lp_elementwise=None):
    """x: (B, hidden_size) -> {'logit': (B, output_size)}."""
    B, H = x.shape
    H_pad, O = fused["H_pad"], fused["output_size"]
    assert H == fused["hidden_size"]
    out_dtype = x.dtype if out_dtype is None else out_dtype
    mxu_dtype = fused["w1"].dtype
    if lp_elementwise is None:
        lp_elementwise = (jnp.dtype(mxu_dtype) == jnp.bfloat16) and _has_bf16_vpu()

    # Per-generation VMEM budgeting (128 MiB v5e/v6e, 64 MiB v7x).
    cap = _vmem_capacity_bytes()
    budget = int(cap * 0.70)         # tile-picking budget (headroom for compiler scratch)
    vmem_limit = int(cap * 0.80)     # explicit scoped-VMEM limit

    x_item = jnp.dtype(x.dtype).itemsize
    w_item = jnp.dtype(mxu_dtype).itemsize
    out_item = jnp.dtype(out_dtype).itemsize
    per_row = _per_row_vmem_bytes(H_pad, O, x_item, w_item, out_item,
                                  jnp.dtype(mxu_dtype) == jnp.float32)
    # weight_bufs=1 assumes the Buffered(1) request is honored; the 0.70 budget vs 0.80
    # limit (vs 1.0 physical) leaves room for the double-buffered fallback.
    fixed = _fixed_vmem_bytes(H_pad, O, w_item, weight_bufs=1)
    TB, B_pad, n_steps = _choose_tiling(B, per_row, fixed, budget, max_batch_tile)

    x_p = x
    if (B_pad, H_pad) != (B, H):
        x_p = jnp.pad(x, ((0, B_pad - B), (0, H_pad - H)))

    kernel = functools.partial(dueling_head_kernel, lp_elementwise=lp_elementwise)

    def _run(single_buffer_weights):
        if single_buffer_weights:
            def wspec(shape):
                return pl.BlockSpec(shape, lambda i: (0, 0), pipeline_mode=pl.Buffered(1))
        else:
            def wspec(shape):
                return pl.BlockSpec(shape, lambda i: (0, 0))
        in_specs = [
            pl.BlockSpec((TB, H_pad), lambda i: (i, 0)),   # x tile (pipelined)
            wspec((H_pad, 2 * H_pad)),                     # W1 (VMEM-resident)
            wspec((1, 2 * H_pad)),                         # b1 (resident)
            wspec((2 * H_pad, O)),                         # W2 (resident)
            wspec((1, O)),                                 # b2 (resident)
        ]
        out_spec = pl.BlockSpec((TB, O), lambda i: (i, 0))  # q tile, true width (no O pad)
        return pl.pallas_call(
            kernel,
            out_shape=jax.ShapeDtypeStruct((B_pad, O), out_dtype),
            grid_spec=pltpu.PrefetchScalarGridSpec(
                num_scalar_prefetch=0,
                grid=(n_steps,),
                in_specs=in_specs,
                out_specs=out_spec,
            ),
            compiler_params=pltpu.CompilerParams(
                dimension_semantics=("parallel",),   # 2 TCs on v7x; no-op on v5e/v6e
                vmem_limit_bytes=vmem_limit,
            ),
        )(x_p, fused["w1"], fused["b1"], fused["w2"], fused["b2"])

    try:
        q = _run(single_buffer_weights=True)     # single-buffer the resident weights
    except Exception:
        q = _run(single_buffer_weights=False)    # fallback: pl.Buffered(1) unsupported here

    if B_pad != B:
        q = q[:B]
    return {"logit": q}


# ----------------------------------------------------------------------------- init / reference
def init_raw_params(key, hidden_size, output_size, dtype=jnp.float32):
    """PyTorch-Linear-like uniform init, weights stored as (in_features, out_features)."""
    ks = jax.random.split(key, 8)

    def lin(kw, kb, fan_in, fan_out):
        bound = 1.0 / (fan_in ** 0.5)
        w = jax.random.uniform(kw, (fan_in, fan_out), dtype, -bound, bound)
        b = jax.random.uniform(kb, (fan_out,), dtype, -bound, bound)
        return w, b

    wa1, ba1 = lin(ks[0], ks[1], hidden_size, hidden_size)
    wa2, ba2 = lin(ks[2], ks[3], hidden_size, output_size)
    wv1, bv1 = lin(ks[4], ks[5], hidden_size, hidden_size)
    wv2, bv2 = lin(ks[6], ks[7], hidden_size, 1)            # (H, 1), (1,)
    return dict(wa1=wa1, ba1=ba1, wa2=wa2, ba2=ba2,
                wv1=wv1, bv1=bv1, wv2=wv2, bv2=bv2)


def _reference_forward(x, raw):
    """Literal (un-fused) JAX transcription of the PyTorch forward, all f32."""
    h_a = jnp.maximum(x @ raw["wa1"] + raw["ba1"], 0.0)
    a = h_a @ raw["wa2"] + raw["ba2"]
    h_v = jnp.maximum(x @ raw["wv1"] + raw["bv1"], 0.0)
    v = h_v @ raw["wv2"] + raw["bv2"]
    return a - a.mean(axis=-1, keepdims=True) + v


# ----------------------------------------------------------------------------- demo
if __name__ == "__main__":
    hidden_size = 128
    output_size = 32

    key = jax.random.PRNGKey(0)
    k_x1, k_x2, k_p = jax.random.split(key, 3)
    raw = init_raw_params(k_p, hidden_size, output_size)

    # Case 1: f32 MXU operands, small batch (single grid step) — tight check vs reference.
    x1 = jax.random.normal(k_x1, (32, hidden_size), dtype=jnp.float32)
    ref1 = _reference_forward(x1, raw)
    fused_f32 = fuse_params(raw, hidden_size, output_size, mxu_dtype=jnp.float32)
    out1 = jax.block_until_ready(dueling_head_forward(x1, fused_f32)["logit"])
    assert out1.shape == (32, output_size), out1.shape
    assert jnp.allclose(out1, ref1, atol=1e-4, rtol=1e-4), "f32 kernel mismatch vs reference"

    # Case 2: bf16 deployment path (bf16 weights + bf16 output), batch not a tile
    # multiple — exercises the >=2-grid-step path and the small batch padding/slice.
    x2 = jax.random.normal(k_x2, (200, hidden_size), dtype=jnp.float32)
    ref2 = _reference_forward(x2, raw)
    fused_bf16 = fuse_params(raw, hidden_size, output_size)            # bf16 default
    out2 = jax.block_until_ready(
        dueling_head_forward(x2, fused_bf16, out_dtype=jnp.bfloat16)["logit"])
    assert out2.shape == (200, output_size), out2.shape
    assert jnp.allclose(out2.astype(jnp.float32), ref2, atol=5e-2, rtol=5e-2), \
        "bf16 kernel mismatch vs reference"

    print("KERNEL_OK")
</pallas_src>

<mosaic_0001>
module attributes {stable_mosaic.version = 11 : i64} {
  func.func @dueling_head_kernel(%arg0: i32, %arg1: memref<32x128xf32, #tpu.memory_space<vmem>>, %arg2: memref<128x256xf32, #tpu.memory_space<vmem>>, %arg3: memref<1x256xf32, #tpu.memory_space<vmem>>, %arg4: memref<256x32xf32, #tpu.memory_space<vmem>>, %arg5: memref<1x32xf32, #tpu.memory_space<vmem>>, %arg6: memref<32x32xf32, #tpu.memory_space<vmem>>) attributes {dimension_semantics = [#tpu.dimension_semantics<parallel>], iteration_bounds = array<i64: 1>, scalar_prefetch = 0 : i64, scratch_operands = 0 : i64, tpu.core_type = #tpu.core_type<tc>, window_params = [{transform_indices = @transform_0, window_bounds = array<i64: 32, 128>}, {pipeline_mode = #tpu.pipeline_mode<synchronous>, transform_indices = @transform_1, window_bounds = array<i64: 128, 256>}, {pipeline_mode = #tpu.pipeline_mode<synchronous>, transform_indices = @transform_2, window_bounds = array<i64: 1, 256>}, {pipeline_mode = #tpu.pipeline_mode<synchronous>, transform_indices = @transform_3, window_bounds = array<i64: 256, 32>}, {pipeline_mode = #tpu.pipeline_mode<synchronous>, transform_indices = @transform_4, window_bounds = array<i64: 1, 32>}, {transform_indices = @transform_5, window_bounds = array<i64: 32, 32>}]} {
    %c0 = arith.constant 0 : index
    %c0_0 = arith.constant 0 : index
    %0 = vector.load %arg1[%c0, %c0_0] : memref<32x128xf32, #tpu.memory_space<vmem>>, vector<32x128xf32>
    %c0_1 = arith.constant 0 : index
    %c0_2 = arith.constant 0 : index
    %1 = vector.load %arg2[%c0_1, %c0_2] : memref<128x256xf32, #tpu.memory_space<vmem>>, vector<128x256xf32>
    %cst = arith.constant dense<0.000000e+00> : vector<32x256xf32>
    %2 = tpu.matmul %0, %1, %cst {dimension_numbers = #tpu.dot_dimension_numbers<[1], [0], [0], [1], [0, 0, 1, 1], [], []>} : vector<32x128xf32>, vector<128x256xf32>, vector<32x256xf32> -> vector<32x256xf32>
    %c0_3 = arith.constant 0 : index
    %c0_4 = arith.constant 0 : index
    %3 = vector.load %arg3[%c0_3, %c0_4] : memref<1x256xf32, #tpu.memory_space<vmem>>, vector<1x256xf32>
    %4 = vector.broadcast %3 : vector<1x256xf32> to vector<32x256xf32>
    %5 = arith.addf %2, %4 : vector<32x256xf32>
    %cst_5 = arith.constant 0.000000e+00 : f32
    %6 = vector.broadcast %cst_5 : f32 to vector<32x256xf32>
    %7 = arith.maximumf %5, %6 : vector<32x256xf32>
    %c0_6 = arith.constant 0 : index
    %c0_7 = arith.constant 0 : index
    %8 = vector.load %arg4[%c0_6, %c0_7] : memref<256x32xf32, #tpu.memory_space<vmem>>, vector<256x32xf32>
    %cst_8 = arith.constant dense<0.000000e+00> : vector<32x32xf32>
    %9 = tpu.matmul %7, %8, %cst_8 {dimension_numbers = #tpu.dot_dimension_numbers<[1], [0], [0], [1], [0, 0, 1, 1], [], []>} : vector<32x256xf32>, vector<256x32xf32>, vector<32x32xf32> -> vector<32x32xf32>
    %c0_9 = arith.constant 0 : index
    %c0_10 = arith.constant 0 : index
    %10 = vector.load %arg5[%c0_9, %c0_10] : memref<1x32xf32, #tpu.memory_space<vmem>>, vector<1x32xf32>
    %11 = vector.broadcast %10 : vector<1x32xf32> to vector<32x32xf32>
    %12 = arith.addf %9, %11 : vector<32x32xf32>
    %c0_11 = arith.constant 0 : index
    %c0_12 = arith.constant 0 : index
    %13 = vector.load %arg6[%c0_11, %c0_12] : memref<32x32xf32, #tpu.memory_space<vmem>>, vector<32x32xf32>
    tpu.vector_store %arg6[%c0_11, %c0_12], %12 {strides = array<i32>} : memref<32x32xf32, #tpu.memory_space<vmem>>, vector<32x32xf32>,
    return
  }
  func.func @transform_0(%arg0: i32) -> (i32, i32) {
    %c0_i32 = arith.constant 0 : i32
    %c0_i32_0 = arith.constant 0 : i32
    return %arg0, %c0_i32 : i32, i32
  }
  func.func @transform_1(%arg0: i32) -> (i32, i32) {
    %c0_i32 = arith.constant 0 : i32
    %c0_i32_0 = arith.constant 0 : i32
    %c0_i32_1 = arith.constant 0 : i32
    return %c0_i32, %c0_i32_0 : i32, i32
  }
  func.func @transform_2(%arg0: i32) -> (i32, i32) {
    %c0_i32 = arith.constant 0 : i32
    %c0_i32_0 = arith.constant 0 : i32
    %c0_i32_1 = arith.constant 0 : i32
    return %c0_i32, %c0_i32_0 : i32, i32
  }
  func.func @transform_3(%arg0: i32) -> (i32, i32) {
    %c0_i32 = arith.constant 0 : i32
    %c0_i32_0 = arith.constant 0 : i32
    %c0_i32_1 = arith.constant 0 : i32
    return %c0_i32, %c0_i32_0 : i32, i32
  }
  func.func @transform_4(%arg0: i32) -> (i32, i32) {
    %c0_i32 = arith.constant 0 : i32
    %c0_i32_0 = arith.constant 0 : i32
    %c0_i32_1 = arith.constant 0 : i32
    return %c0_i32, %c0_i32_0 : i32, i32
  }
  func.func @transform_5(%arg0: i32) -> (i32, i32) {
    %c0_i32 = arith.constant 0 : i32
    %c0_i32_0 = arith.constant 0 : i32
    return %arg0, %c0_i32 : i32, i32
  }
}

module attributes {stable_mosaic.version = 11 : i64} {
  func.func @dueling_head_kernel(%arg0: i32, %arg1: memref<32x128xf32, #tpu.memory_space<vmem>>, %arg2: memref<128x256xf32, #tpu.memory_space<vmem>>, %arg3: memref<1x256xf32, #tpu.memory_space<vmem>>, %arg4: memref<256x32xf32, #tpu.memory_space<vmem>>, %arg5: memref<1x32xf32, #tpu.memory_space<vmem>>, %arg6: memref<32x32xf32, #tpu.memory_space<vmem>>) attributes {dimension_semantics = [#tpu.dimension_semantics<parallel>], iteration_bounds = array<i64: 1>, scalar_prefetch = 0 : i64, scratch_operands = 0 : i64, tpu.core_type = #tpu.core_type<tc>, window_params = [{transform_indices = @transform_0, window_bounds = array<i64: 32, 128>}, {pipeline_mode = #tpu.pipeline_mode<synchronous>, transform_indices = @transform_1, window_bounds = array<i64: 128, 256>}, {pipeline_mode = #tpu.pipeline_mode<synchronous>, transform_indices = @transform_2, window_bounds = array<i64: 1, 256>}, {pipeline_mode = #tpu.pipeline_mode<synchronous>, transform_indices = @transform_3, window_bounds = array<i64: 256, 32>}, {pipeline_mode = #tpu.pipeline_mode<synchronous>, transform_indices = @transform_4, window_bounds = array<i64: 1, 32>}, {transform_indices = @transform_5, window_bounds = array<i64: 32, 32>}]} {
    %c0 = arith.constant 0 : index
    %c0_0 = arith.constant 0 : index
    %0 = vector.load %arg1[%c0, %c0_0] : memref<32x128xf32, #tpu.memory_space<vmem>>, vector<32x128xf32>
    %c0_1 = arith.constant 0 : index
    %c0_2 = arith.constant 0 : index
    %1 = vector.load %arg2[%c0_1, %c0_2] : memref<128x256xf32, #tpu.memory_space<vmem>>, vector<128x256xf32>
    %cst = arith.constant dense<0.000000e+00> : vector<32x256xf32>
    %2 = tpu.matmul %0, %1, %cst {dimension_numbers = #tpu.dot_dimension_numbers<[1], [0], [0], [1], [0, 0, 1, 1], [], []>} : vector<32x128xf32>, vector<128x256xf32>, vector<32x256xf32> -> vector<32x256xf32>
    %c0_3 = arith.constant 0 : index
    %c0_4 = arith.constant 0 : index
    %3 = vector.load %arg3[%c0_3, %c0_4] : memref<1x256xf32, #tpu.memory_space<vmem>>, vector<1x256xf32>
    %4 = vector.broadcast %3 : vector<1x256xf32> to vector<32x256xf32>
    %5 = arith.addf %2, %4 : vector<32x256xf32>
    %cst_5 = arith.constant 0.000000e+00 : f32
    %6 = vector.broadcast %cst_5 : f32 to vector<32x256xf32>
    %7 = arith.maximumf %5, %6 : vector<32x256xf32>
    %c0_6 = arith.constant 0 : index
    %c0_7 = arith.constant 0 : index
    %8 = vector.load %arg4[%c0_6, %c0_7] : memref<256x32xf32, #tpu.memory_space<vmem>>, vector<256x32xf32>
    %cst_8 = arith.constant dense<0.000000e+00> : vector<32x32xf32>
    %9 = tpu.matmul %7, %8, %cst_8 {dimension_numbers = #tpu.dot_dimension_numbers<[1], [0], [0], [1], [0, 0, 1, 1], [], []>} : vector<32x256xf32>, vector<256x32xf32>, vector<32x32xf32> -> vector<32x32xf32>
    %c0_9 = arith.constant 0 : index
    %c0_10 = arith.constant 0 : index
    %10 = vector.load %arg5[%c0_9, %c0_10] : memref<1x32xf32, #tpu.memory_space<vmem>>, vector<1x32xf32>
    %11 = vector.broadcast %10 : vector<1x32xf32> to vector<32x32xf32>
    %12 = arith.addf %9, %11 : vector<32x32xf32>
    %c0_11 = arith.constant 0 : index
    %c0_12 = arith.constant 0 : index
    %13 = vector.load %arg6[%c0_11, %c0_12] : memref<32x32xf32, #tpu.memory_space<vmem>>, vector<32x32xf32>
    tpu.vector_store %arg6[%c0_11, %c0_12], %12 {strides = array<i32>} : memref<32x32xf32, #tpu.memory_space<vmem>>, vector<32x32xf32>,
    return
  }
  func.func @transform_0(%arg0: i32) -> (i32, i32) {
    %c0_i32 = arith.constant 0 : i32
    %c0_i32_0 = arith.constant 0 : i32
    return %arg0, %c0_i32 : i32, i32
  }
  func.func @transform_1(%arg0: i32) -> (i32, i32) {
    %c0_i32 = arith.constant 0 : i32
    %c0_i32_0 = arith.constant 0 : i32
    %c0_i32_1 = arith.constant 0 : i32
    return %c0_i32, %c0_i32_0 : i32, i32
  }
  func.func @transform_2(%arg0: i32) -> (i32, i32) {
    %c0_i32 = arith.constant 0 : i32
    %c0_i32_0 = arith.constant 0 : i32
    %c0_i32_1 = arith.constant 0 : i32
    return %c0_i32, %c0_i32_0 : i32, i32
  }
  func.func @transform_3(%arg0: i32) -> (i32, i32) {
    %c0_i32 = arith.constant 0 : i32
    %c0_i32_0 = arith.constant 0 : i32
    %c0_i32_1 = arith.constant 0 : i32
    return %c0_i32, %c0_i32_0 : i32, i32
  }
  func.func @transform_4(%arg0: i32) -> (i32, i32) {
    %c0_i32 = arith.constant 0 : i32
    %c0_i32_0 = arith.constant 0 : i32
    %c0_i32_1 = arith.constant 0 : i32
    return %c0_i32, %c0_i32_0 : i32, i32
  }
  func.func @transform_5(%arg0: i32) -> (i32, i32) {
    %c0_i32 = arith.constant 0 : i32
    %c0_i32_0 = arith.constant 0 : i32
    return %arg0, %c0_i32 : i32, i32
  }
}

</mosaic_0001>

<llo_original>
// kernel: tpu_custom_call.1
$region0: #{tpu_custom_call.1}
  #allocation0 [shape = 'u32[]', space=smem, size = 0x4, offset = 0x4, fixed_abs, tag = 'smem constant byte address 0x4 - core index']
  #allocation1 [shape = 'u32[144,128]{1,0:T(1,128)}', space=vmem, size = 0x12000, scoped, tag = 'internal scratch']
  %s0 = inlined_call_operand.vmem [shape: f32[32,128], index: 0, kind: input, shape index: {}]
  %s1 = inlined_call_operand.vmem [shape: f32[128,256], index: 1, kind: input, shape index: {}]
  %s2 = inlined_call_operand.vmem [shape: f32[1,256], index: 2, kind: input, shape index: {}]
  %s3 = inlined_call_operand.vmem [shape: f32[256,32], index: 3, kind: input, shape index: {}]
  %s4 = inlined_call_operand.vmem [shape: f32[1,32], index: 4, kind: input, shape index: {}]
  %s5 = inlined_call_operand.hbm [shape: f32[32,32], index: 5, kind: output, shape index: {}]
  %s6 = sld [smem:[#allocation0]]
  $region30: #{tpu_custom_call.1} parent=0
    _
  %s8 = ssub.s32 1, %s6
  %s9 = scalar_select 0, %s8, %s6
  $region1: #{tpu_custom_call.1} parent=0
    #allocation2 [shape = 'u8[16384]{0}', space=vmem, size = 0x4000, scoped, tag = 'output window, operand 0, single buffered']
    #allocation3 [shape = 's32[1]{0}', space=sflag, size = 0x4, scoped, tag = 'scoped memory for tpu_custom_call.1']
    %10 = vsyncpa [#allocation3], 0
    // Predicated region
    $region2: #{tpu_custom_call.1} parent=1 // pred_check
      _
    $region3: #{tpu_custom_call.1} parent=1 // pred_check_branch
      %12 = sbr.rel (0) target = $region5
    $region4: #{tpu_custom_call.1} parent=1 // pred_region
      _
    $region5: #{tpu_custom_call.1} parent=1 // pred_fallthru
      _
    // Predicated region
    $region6: #{tpu_custom_call.1} parent=1 // pred_check
      _
    $region7: #{tpu_custom_call.1} parent=1 // pred_check_branch
      %14 = sbr.rel (0) target = $region9
    $region8: #{tpu_custom_call.1} parent=1 // pred_region
      _
    $region9: #{tpu_custom_call.1} parent=1 // pred_fallthru
      _
    // Predicated region
    $region10: #{tpu_custom_call.1} parent=1 // pred_check
      _
    $region11: #{tpu_custom_call.1} parent=1 // pred_check_branch
      %16 = sbr.rel (0) target = $region13
    $region12: #{tpu_custom_call.1} parent=1 // pred_region
      _
    $region13: #{tpu_custom_call.1} parent=1 // pred_fallthru
      _
    // Predicated region
    $region14: #{tpu_custom_call.1} parent=1 // pred_check
      _
    $region15: #{tpu_custom_call.1} parent=1 // pred_check_branch
      %18 = sbr.rel (0) target = $region17
    $region16: #{tpu_custom_call.1} parent=1 // pred_region
      _
    $region17: #{tpu_custom_call.1} parent=1 // pred_fallthru
      _
    // Predicated region
    $region18: #{tpu_custom_call.1} parent=1 // pred_check
      _
    $region19: #{tpu_custom_call.1} parent=1 // pred_check_branch
      %20 = sbr.rel (0) target = $region21
    $region20: #{tpu_custom_call.1} parent=1 // pred_region
      _
    $region21: #{tpu_custom_call.1} parent=1 // pred_fallthru
      _
    %v21 = vld [vmem:[%s0] sm:$0xff]
    %v22 = vld [vmem:[%s0 + $0x8] sm:$0xff]
    %v23 = vld [vmem:[%s0 + $0x10] sm:$0xff]
    %v24 = vld [vmem:[%s0 + $0x18] sm:$0xff]
    %v25 = vld [vmem:[%s1] sm:$0xff]
    %v26 = vld [vmem:[%s1 + $0x8] sm:$0xff]
    %v27 = vld [vmem:[%s1 + $0x10] sm:$0xff]
    %v28 = vld [vmem:[%s1 + $0x18] sm:$0xff]
    %v29 = vld [vmem:[%s1 + $0x20] sm:$0xff]
    %v30 = vld [vmem:[%s1 + $0x28] sm:$0xff]
    %v31 = vld [vmem:[%s1 + $0x30] sm:$0xff]
    %v32 = vld [vmem:[%s1 + $0x38] sm:$0xff]
    %v33 = vld [vmem:[%s1 + $0x40] sm:$0xff]
    %v34 = vld [vmem:[%s1 + $0x48] sm:$0xff]
    %v35 = vld [vmem:[%s1 + $0x50] sm:$0xff]
    %v36 = vld [vmem:[%s1 + $0x58] sm:$0xff]
    %v37 = vld [vmem:[%s1 + $0x60] sm:$0xff]
    %v38 = vld [vmem:[%s1 + $0x68] sm:$0xff]
    %v39 = vld [vmem:[%s1 + $0x70] sm:$0xff]
    %v40 = vld [vmem:[%s1 + $0x78] sm:$0xff]
    %v41 = vld [vmem:[%s1 + $0x80] sm:$0xff]
    %v42 = vld [vmem:[%s1 + $0x88] sm:$0xff]
    %v43 = vld [vmem:[%s1 + $0x90] sm:$0xff]
    %v44 = vld [vmem:[%s1 + $0x98] sm:$0xff]
    %v45 = vld [vmem:[%s1 + $0xa0] sm:$0xff]
    %v46 = vld [vmem:[%s1 + $0xa8] sm:$0xff]
    %v47 = vld [vmem:[%s1 + $0xb0] sm:$0xff]
    %v48 = vld [vmem:[%s1 + $0xb8] sm:$0xff]
    %v49 = vld [vmem:[%s1 + $0xc0] sm:$0xff]
    %v50 = vld [vmem:[%s1 + $0xc8] sm:$0xff]
    %v51 = vld [vmem:[%s1 + $0xd0] sm:$0xff]
    %v52 = vld [vmem:[%s1 + $0xd8] sm:$0xff]
    %v53 = vld [vmem:[%s1 + $0xe0] sm:$0xff]
    %v54 = vld [vmem:[%s1 + $0xe8] sm:$0xff]
    %v55 = vld [vmem:[%s1 + $0xf0] sm:$0xff]
    %v56 = vld [vmem:[%s1 + $0xf8] sm:$0xff]
    %v57 = vld [vmem:[%s2] sm:$0x3]
    %v59 = vlaneseq
    %v60 = vshrl.u32 %v59, 7
    %v61 = vsub.s32 0, %v60
    %v62 = vrot.slane %v57, %v61
    %v63 = vlaneseq
    %v64 = vshrl.u32 %v63, 7
    %v65 = vsub.s32 1, %v64
    %v66 = vrot.slane %v57, %v65
    %69 = vmatprep.subr.mxu0 %v26
    %70 = vmatpush1.msra.mxu0 %v25
    %71 = vmatprep.subr.mxu0 %v28
    %72 = vmatpush1.msra.mxu0 %v27
    %73 = vmatprep.subr.mxu0 %v30
    %74 = vmatpush1.msra.mxu0 %v29
    %75 = vmatprep.subr.mxu0 %v32
    %76 = vmatpush1.msra.mxu0 %v31
    %77 = vmatprep.subr.mxu0 %v34
    %78 = vmatpush1.msra.mxu0 %v33
    %79 = vmatprep.subr.mxu0 %v36
    %80 = vmatpush1.msra.mxu0 %v35
    %81 = vmatprep.subr.mxu0 %v38
    %82 = vmatpush1.msra.mxu0 %v37
    %83 = vmatprep.subr.mxu0 %v40
    %84 = vmatpush1.msra.mxu0 %v39
    %85 = vmatprep.subr.mxu0 %v42
    %86 = vmatpush1.msra.mxu0 %v41
    %87 = vmatprep.subr.mxu0 %v44
    %88 = vmatpush1.msra.mxu0 %v43
    %89 = vmatprep.subr.mxu0 %v46
    %90 = vmatpush1.msra.mxu0 %v45
    %91 = vmatprep.subr.mxu0 %v48
    %92 = vmatpush1.msra.mxu0 %v47
    %93 = vmatprep.subr.mxu0 %v50
    %94 = vmatpush1.msra.mxu0 %v49
    %95 = vmatprep.subr.mxu0 %v52
    %96 = vmatpush1.msra.mxu0 %v51
    %97 = vmatprep.subr.mxu0 %v54
    %98 = vmatpush1.msra.mxu0 %v53
    %99 = vmatprep.subr.mxu0 %v56
    %100 = vmatpush1.msra.mxu0 %v55
    %101 = vmatprep.subr.mxu0 0.0
    %102 = vmatpush1.msra.mxu0 0.0
    %103 = vmatprep.subr.mxu0 0.0
    %104 = vmatpush1.msra.mxu0 0.0
    %105 = vmatprep.subr.mxu0 0.0
    %106 = vmatpush1.msra.mxu0 0.0
    %107 = vmatprep.subr.mxu0 0.0
    %108 = vmatpush1.msra.mxu0 0.0
    %109 = vmatprep.subr.mxu0 0.0
    %110 = vmatpush1.msra.mxu0 0.0
    %111 = vmatprep.subr.mxu0 0.0
    %112 = vmatpush1.msra.mxu0 0.0
    %113 = vmatprep.subr.mxu0 0.0
    %114 = vmatpush1.msra.mxu0 0.0
    %115 = vmatprep.subr.mxu0 0.0
    %116 = vmatpush1.msra.mxu0 0.0
    %117 = vmatprep.subr.mxu0 0.0
    %118 = vmatpush1.msra.mxu0 0.0
    %119 = vmatprep.subr.mxu0 0.0
    %120 = vmatpush1.msra.mxu0 0.0
    %121 = vmatprep.subr.mxu0 0.0
    %122 = vmatpush1.msra.mxu0 0.0
    %123 = vmatprep.subr.mxu0 0.0
    %124 = vmatpush1.msra.mxu0 0.0
    %125 = vmatprep.subr.mxu0 0.0
    %126 = vmatpush1.msra.mxu0 0.0
    %127 = vmatprep.subr.mxu0 0.0
    %128 = vmatpush1.msra.mxu0 0.0
    %129 = vmatprep.subr.mxu0 0.0
    %130 = vmatpush1.msra.mxu0 0.0
    %131 = vmatprep.subr.mxu0 0.0
    %132 = vmatpush1.msra.mxu0 0.0
    %133 = vmatprep.mubr.f32.mxu0 0.0
    %134 = vmatmul.mubr.f32.gmra.mrb[0].mxu0 %v21
    %v135 = vpop.f32.mrb[0].mxu0
    %v136 = vadd.f32 %v62, %v135
    %v137 = vpop.f32.mrb[0].mxu0
    %v138 = vadd.f32 %v66, %v137
    %139 = vmatprep.mubr.f32.mxu0 0.0
    %140 = vmatmul.mubr.f32.gmra.mrb[0].mxu0 %v22
    %v141 = vpop.f32.mrb[0].mxu0
    %v142 = vadd.f32 %v62, %v141
    %v143 = vpop.f32.mrb[0].mxu0
    %v144 = vadd.f32 %v66, %v143
    %145 = vmatprep.mubr.f32.mxu0 0.0
    %146 = vmatmul.mubr.f32.gmra.mrb[0].mxu0 %v23
    %v147 = vpop.f32.mrb[0].mxu0
    %v148 = vadd.f32 %v62, %v147
    %v149 = vpop.f32.mrb[0].mxu0
    %v150 = vadd.f32 %v66, %v149
    %151 = vmatprep.mubr.f32.mxu0 0.0
    %152 = vmatmul.mubr.f32.gmra.mrb[0].mxu0 %v24
    %v153 = vpop.f32.mrb[0].mxu0
    %v154 = vadd.f32 %v62, %v153
    %v155 = vpop.f32.mrb[0].mxu0
    %v156 = vadd.f32 %v66, %v155
    %157 = vdwg.mxu0
    %v158 = vmax.f32 %v136, 0.0
    %v159 = vmax.f32 %v138, 0.0
    %v160 = vmax.f32 %v142, 0.0
    %v161 = vmax.f32 %v144, 0.0
    %v162 = vmax.f32 %v148, 0.0
    %v163 = vmax.f32 %v150, 0.0
    %v164 = vmax.f32 %v154, 0.0
    %v165 = vmax.f32 %v156, 0.0
    %v166 = vld [vmem:[%s3] sm:$0xff]
    %v167 = vld [vmem:[%s3 + $0x8] sm:$0xff]
    %v168 = vld [vmem:[%s3 + $0x10] sm:$0xff]
    %v169 = vld [vmem:[%s3 + $0x18] sm:$0xff]
    %v170 = vld [vmem:[%s3 + $0x20] sm:$0xff]
    %v171 = vld [vmem:[%s3 + $0x28] sm:$0xff]
    %v172 = vld [vmem:[%s3 + $0x30] sm:$0xff]
    %v173 = vld [vmem:[%s3 + $0x38] sm:$0xff]
    %v174 = vld [vmem:[%s3 + $0x40] sm:$0xff]
    %v175 = vld [vmem:[%s3 + $0x48] sm:$0xff]
    %v176 = vld [vmem:[%s3 + $0x50] sm:$0xff]
    %v177 = vld [vmem:[%s3 + $0x58] sm:$0xff]
    %v178 = vld [vmem:[%s3 + $0x60] sm:$0xff]
    %v179 = vld [vmem:[%s3 + $0x68] sm:$0xff]
    %v180 = vld [vmem:[%s3 + $0x70] sm:$0xff]
    %v181 = vld [vmem:[%s3 + $0x78] sm:$0xff]
    %v182 = vld [vmem:[%s3 + $0x80] sm:$0xff]
    %v183 = vld [vmem:[%s3 + $0x88] sm:$0xff]
    %v184 = vld [vmem:[%s3 + $0x90] sm:$0xff]
    %v185 = vld [vmem:[%s3 + $0x98] sm:$0xff]
    %v186 = vld [vmem:[%s3 + $0xa0] sm:$0xff]
    %v187 = vld [vmem:[%s3 + $0xa8] sm:$0xff]
    %v188 = vld [vmem:[%s3 + $0xb0] sm:$0xff]
    %v189 = vld [vmem:[%s3 + $0xb8] sm:$0xff]
    %v190 = vld [vmem:[%s3 + $0xc0] sm:$0xff]
    %v191 = vld [vmem:[%s3 + $0xc8] sm:$0xff]
    %v192 = vld [vmem:[%s3 + $0xd0] sm:$0xff]
    %v193 = vld [vmem:[%s3 + $0xd8] sm:$0xff]
    %v194 = vld [vmem:[%s3 + $0xe0] sm:$0xff]
    %v195 = vld [vmem:[%s3 + $0xe8] sm:$0xff]
    %v196 = vld [vmem:[%s3 + $0xf0] sm:$0xff]
    %v197 = vld [vmem:[%s3 + $0xf8] sm:$0xff]
    %v198 = vld [vmem:[%s4] sm:$0x1]
    %v200 = vlaneseq
    %v201 = vshrl.u32 %v200, 7
    %v202 = vsub.s32 0, %v201
    %v203 = vrot.slane %v198, %v202
    %205 = vmatprep.subr.mxu0 0.0
    %206 = vmatpush1.msra.mxu0 %v166
    %207 = vmatprep.subr.mxu0 0.0
    %208 = vmatpush1.msra.mxu0 %v167
    %209 = vmatprep.subr.mxu0 0.0
    %210 = vmatpush1.msra.mxu0 %v168
    %211 = vmatprep.subr.mxu0 0.0
    %212 = vmatpush1.msra.mxu0 %v169
    %213 = vmatprep.subr.mxu0 0.0
    %214 = vmatpush1.msra.mxu0 %v170
    %215 = vmatprep.subr.mxu0 0.0
    %216 = vmatpush1.msra.mxu0 %v171
    %217 = vmatprep.subr.mxu0 0.0
    %218 = vmatpush1.msra.mxu0 %v172
    %219 = vmatprep.subr.mxu0 0.0
    %220 = vmatpush1.msra.mxu0 %v173
    %221 = vmatprep.subr.mxu0 0.0
    %222 = vmatpush1.msra.mxu0 %v174
    %223 = vmatprep.subr.mxu0 0.0
    %224 = vmatpush1.msra.mxu0 %v175
    %225 = vmatprep.subr.mxu0 0.0
    %226 = vmatpush1.msra.mxu0 %v176
    %227 = vmatprep.subr.mxu0 0.0
    %228 = vmatpush1.msra.mxu0 %v177
    %229 = vmatprep.subr.mxu0 0.0
    %230 = vmatpush1.msra.mxu0 %v178
    %231 = vmatprep.subr.mxu0 0.0
    %232 = vmatpush1.msra.mxu0 %v179
    %233 = vmatprep.subr.mxu0 0.0
    %234 = vmatpush1.msra.mxu0 %v180
    %235 = vmatprep.subr.mxu0 0.0
    %236 = vmatpush1.msra.mxu0 %v181
    %237 = vmatprep.subr.mxu0 0.0
    %238 = vmatpush1.msra.mxu0 %v182
    %239 = vmatprep.subr.mxu0 0.0
    %240 = vmatpush1.msra.mxu0 %v183
    %241 = vmatprep.subr.mxu0 0.0
    %242 = vmatpush1.msra.mxu0 %v184
    %243 = vmatprep.subr.mxu0 0.0
    %244 = vmatpush1.msra.mxu0 %v185
    %245 = vmatprep.subr.mxu0 0.0
    %246 = vmatpush1.msra.mxu0 %v186
    %247 = vmatprep.subr.mxu0 0.0
    %248 = vmatpush1.msra.mxu0 %v187
    %249 = vmatprep.subr.mxu0 0.0
    %250 = vmatpush1.msra.mxu0 %v188
    %251 = vmatprep.subr.mxu0 0.0
    %252 = vmatpush1.msra.mxu0 %v189
    %253 = vmatprep.subr.mxu0 0.0
    %254 = vmatpush1.msra.mxu0 %v190
    %255 = vmatprep.subr.mxu0 0.0
    %256 = vmatpush1.msra.mxu0 %v191
    %257 = vmatprep.subr.mxu0 0.0
    %258 = vmatpush1.msra.mxu0 %v192
    %259 = vmatprep.subr.mxu0 0.0
    %260 = vmatpush1.msra.mxu0 %v193
    %261 = vmatprep.subr.mxu0 0.0
    %262 = vmatpush1.msra.mxu0 %v194
    %263 = vmatprep.subr.mxu0 0.0
    %264 = vmatpush1.msra.mxu0 %v195
    %265 = vmatprep.subr.mxu0 0.0
    %266 = vmatpush1.msra.mxu0 %v196
    %267 = vmatprep.subr.mxu0 0.0
    %268 = vmatpush1.msra.mxu0 %v197
    %269 = vmatprep.mubr.f32.mxu0 %v159
    %270 = vmatmul.mubr.f32.gmra.mrb[0].mxu0 %v158
    %v271 = vpop.f32.mrb[0].mxu0
    %v272 = vadd.f32 %v203, %v271
    %v273 = vpop.f32.mrb[0].mxu0
    %274 = vmatprep.mubr.f32.mxu0 %v161
    %275 = vmatmul.mubr.f32.gmra.mrb[0].mxu0 %v160
    %v276 = vpop.f32.mrb[0].mxu0
    %v277 = vadd.f32 %v203, %v276
    %v278 = vpop.f32.mrb[0].mxu0
    %279 = vmatprep.mubr.f32.mxu0 %v163
    %280 = vmatmul.mubr.f32.gmra.mrb[0].mxu0 %v162
    %v281 = vpop.f32.mrb[0].mxu0
    %v282 = vadd.f32 %v203, %v281
    %v283 = vpop.f32.mrb[0].mxu0
    %284 = vmatprep.mubr.f32.mxu0 %v165
    %285 = vmatmul.mubr.f32.gmra.mrb[0].mxu0 %v164
    %v286 = vpop.f32.mrb[0].mxu0
    %v287 = vadd.f32 %v203, %v286
    %v288 = vpop.f32.mrb[0].mxu0
    %289 = vdwg.mxu0
    %vm290 = vcmask 261120
    %291 = vst.msk [vmem:[#allocation2] sm:$0xff] %vm290, %v272
    %292 = vst.msk [vmem:[#allocation2 + $0x8] sm:$0xff] %vm290, %v277
    %293 = vst.msk [vmem:[#allocation2 + $0x10] sm:$0xff] %vm290, %v282
    %294 = vst.msk [vmem:[#allocation2 + $0x18] sm:$0xff] %vm290, %v287
    // Predicated region
    $region22: #{tpu_custom_call.1} parent=1 // pred_check
      _
    $region23: #{tpu_custom_call.1} parent=1 // pred_check_branch
      %296 = sbr.rel (0) target = $region25
    $region24: #{tpu_custom_call.1} parent=1 // pred_region
      %s298 = ssub.s32 512, 512
      %299 = vsyncadd [#allocation3], %s298
      %s300 = sshll.u32 [#allocation2], 4
      %s301 = int_to_ptr.vmem [resolvable:$true] %s300
      %306 = dma.vmem_to_hbm [thread:$0]  %s301, 512, %s5, [#allocation3], 128, 128, 8
    $region25: #{tpu_custom_call.1} parent=1 // pred_fallthru
      _
    // Predicated region
    $region26: #{tpu_custom_call.1} parent=1 // pred_check
      _
    $region27: #{tpu_custom_call.1} parent=1 // pred_check_branch
      %308 = sbr.rel (0) target = $region29
    $region28: #{tpu_custom_call.1} parent=1 // pred_region
      %309 = dma.done [#allocation3], 512
    $region29: #{tpu_custom_call.1} parent=1 // pred_fallthru
      _
    %310 = vsyncpa [#allocation3], 1

// kernel: tpu_custom_call.1
$region0: #{tpu_custom_call.1}
  #allocation0 [shape = 'u32[]', space=smem, size = 0x4, offset = 0x4, fixed_abs, tag = 'smem constant byte address 0x4 - core index']
  #allocation1 [shape = 'u32[144,128]{1,0:T(1,128)}', space=vmem, size = 0x12000, scoped, tag = 'internal scratch']
  %s0 = inlined_call_operand.vmem [shape: f32[32,128], index: 0, kind: input, shape index: {}]
  %s1 = inlined_call_operand.vmem [shape: f32[128,256], index: 1, kind: input, shape index: {}]
  %s2 = inlined_call_operand.vmem [shape: f32[1,256], index: 2, kind: input, shape index: {}]
  %s3 = inlined_call_operand.vmem [shape: f32[256,32], index: 3, kind: input, shape index: {}]
  %s4 = inlined_call_operand.vmem [shape: f32[1,32], index: 4, kind: input, shape index: {}]
  %s5 = inlined_call_operand.hbm [shape: f32[32,32], index: 5, kind: output, shape index: {}]
  %s6 = sld [smem:[#allocation0]]
  $region30: #{tpu_custom_call.1} parent=0
    _
  %s8 = ssub.s32 1, %s6
  %s9 = scalar_select 0, %s8, %s6
  $region1: #{tpu_custom_call.1} parent=0
    #allocation2 [shape = 'u8[16384]{0}', space=vmem, size = 0x4000, scoped, tag = 'output window, operand 0, single buffered']
    #allocation3 [shape = 's32[1]{0}', space=sflag, size = 0x4, scoped, tag = 'scoped memory for tpu_custom_call.1']
    %10 = vsyncpa [#allocation3], 0
    // Predicated region
    $region2: #{tpu_custom_call.1} parent=1 // pred_check
      _
    $region3: #{tpu_custom_call.1} parent=1 // pred_check_branch
      %12 = sbr.rel (0) target = $region5
    $region4: #{tpu_custom_call.1} parent=1 // pred_region
      _
    $region5: #{tpu_custom_call.1} parent=1 // pred_fallthru
      _
    // Predicated region
    $region6: #{tpu_custom_call.1} parent=1 // pred_check
      _
    $region7: #{tpu_custom_call.1} parent=1 // pred_check_branch
      %14 = sbr.rel (0) target = $region9
    $region8: #{tpu_custom_call.1} parent=1 // pred_region
      _
    $region9: #{tpu_custom_call.1} parent=1 // pred_fallthru
      _
    // Predicated region
    $region10: #{tpu_custom_call.1} parent=1 // pred_check
      _
    $region11: #{tpu_custom_call.1} parent=1 // pred_check_branch
      %16 = sbr.rel (0) target = $region13
    $region12: #{tpu_custom_call.1} parent=1 // pred_region
      _
    $region13: #{tpu_custom_call.1} parent=1 // pred_fallthru
      _
    // Predicated region
    $region14: #{tpu_custom_call.1} parent=1 // pred_check
      _
    $region15: #{tpu_custom_call.1} parent=1 // pred_check_branch
      %18 = sbr.rel (0) target = $region17
    $region16: #{tpu_custom_call.1} parent=1 // pred_region
      _
    $region17: #{tpu_custom_call.1} parent=1 // pred_fallthru
      _
    // Predicated region
    $region18: #{tpu_custom_call.1} parent=1 // pred_check
      _
    $region19: #{tpu_custom_call.1} parent=1 // pred_check_branch
      %20 = sbr.rel (0) target = $region21
    $region20: #{tpu_custom_call.1} parent=1 // pred_region
      _
    $region21: #{tpu_custom_call.1} parent=1 // pred_fallthru
      _
    %v21 = vld [vmem:[%s0] sm:$0xff]
    %v22 = vld [vmem:[%s0 + $0x8] sm:$0xff]
    %v23 = vld [vmem:[%s0 + $0x10] sm:$0xff]
    %v24 = vld [vmem:[%s0 + $0x18] sm:$0xff]
    %v25 = vld [vmem:[%s1] sm:$0xff]
    %v26 = vld [vmem:[%s1 + $0x8] sm:$0xff]
    %v27 = vld [vmem:[%s1 + $0x10] sm:$0xff]
    %v28 = vld [vmem:[%s1 + $0x18] sm:$0xff]
    %v29 = vld [vmem:[%s1 + $0x20] sm:$0xff]
    %v30 = vld [vmem:[%s1 + $0x28] sm:$0xff]
    %v31 = vld [vmem:[%s1 + $0x30] sm:$0xff]
    %v32 = vld [vmem:[%s1 + $0x38] sm:$0xff]
    %v33 = vld [vmem:[%s1 + $0x40] sm:$0xff]
    %v34 = vld [vmem:[%s1 + $0x48] sm:$0xff]
    %v35 = vld [vmem:[%s1 + $0x50] sm:$0xff]
    %v36 = vld [vmem:[%s1 + $0x58] sm:$0xff]
    %v37 = vld [vmem:[%s1 + $0x60] sm:$0xff]
    %v38 = vld [vmem:[%s1 + $0x68] sm:$0xff]
    %v39 = vld [vmem:[%s1 + $0x70] sm:$0xff]
    %v40 = vld [vmem:[%s1 + $0x78] sm:$0xff]
    %v41 = vld [vmem:[%s1 + $0x80] sm:$0xff]
    %v42 = vld [vmem:[%s1 + $0x88] sm:$0xff]
    %v43 = vld [vmem:[%s1 + $0x90] sm:$0xff]
    %v44 = vld [vmem:[%s1 + $0x98] sm:$0xff]
    %v45 = vld [vmem:[%s1 + $0xa0] sm:$0xff]
    %v46 = vld [vmem:[%s1 + $0xa8] sm:$0xff]
    %v47 = vld [vmem:[%s1 + $0xb0] sm:$0xff]
    %v48 = vld [vmem:[%s1 + $0xb8] sm:$0xff]
    %v49 = vld [vmem:[%s1 + $0xc0] sm:$0xff]
    %v50 = vld [vmem:[%s1 + $0xc8] sm:$0xff]
    %v51 = vld [vmem:[%s1 + $0xd0] sm:$0xff]
    %v52 = vld [vmem:[%s1 + $0xd8] sm:$0xff]
    %v53 = vld [vmem:[%s1 + $0xe0] sm:$0xff]
    %v54 = vld [vmem:[%s1 + $0xe8] sm:$0xff]
    %v55 = vld [vmem:[%s1 + $0xf0] sm:$0xff]
    %v56 = vld [vmem:[%s1 + $0xf8] sm:$0xff]
    %v57 = vld [vmem:[%s2] sm:$0x3]
    %v59 = vlaneseq
    %v60 = vshrl.u32 %v59, 7
    %v61 = vsub.s32 0, %v60
    %v62 = vrot.slane %v57, %v61
    %v63 = vlaneseq
    %v64 = vshrl.u32 %v63, 7
    %v65 = vsub.s32 1, %v64
    %v66 = vrot.slane %v57, %v65
    %69 = vmatprep.subr.mxu0 %v26
    %70 = vmatpush1.msra.mxu0 %v25
    %71 = vmatprep.subr.mxu0 %v28
    %72 = vmatpush1.msra.mxu0 %v27
    %73 = vmatprep.subr.mxu0 %v30
    %74 = vmatpush1.msra.mxu0 %v29
    %75 = vmatprep.subr.mxu0 %v32
    %76 = vmatpush1.msra.mxu0 %v31
    %77 = vmatprep.subr.mxu0 %v34
    %78 = vmatpush1.msra.mxu0 %v33
    %79 = vmatprep.subr.mxu0 %v36
    %80 = vmatpush1.msra.mxu0 %v35
    %81 = vmatprep.subr.mxu0 %v38
    %82 = vmatpush1.msra.mxu0 %v37
    %83 = vmatprep.subr.mxu0 %v40
    %84 = vmatpush1.msra.mxu0 %v39
    %85 = vmatprep.subr.mxu0 %v42
    %86 = vmatpush1.msra.mxu0 %v41
    %87 = vmatprep.subr.mxu0 %v44
    %88 = vmatpush1.msra.mxu0 %v43
    %89 = vmatprep.subr.mxu0 %v46
    %90 = vmatpush1.msra.mxu0 %v45
    %91 = vmatprep.subr.mxu0 %v48
    %92 = vmatpush1.msra.mxu0 %v47
    %93 = vmatprep.subr.mxu0 %v50
    %94 = vmatpush1.msra.mxu0 %v49
    %95 = vmatprep.subr.mxu0 %v52
    %96 = vmatpush1.msra.mxu0 %v51
    %97 = vmatprep.subr.mxu0 %v54
    %98 = vmatpush1.msra.mxu0 %v53
    %99 = vmatprep.subr.mxu0 %v56
    %100 = vmatpush1.msra.mxu0 %v55
    %101 = vmatprep.subr.mxu0 0.0
    %102 = vmatpush1.msra.mxu0 0.0
    %103 = vmatprep.subr.mxu0 0.0
    %104 = vmatpush1.msra.mxu0 0.0
    %105 = vmatprep.subr.mxu0 0.0
    %106 = vmatpush1.msra.mxu0 0.0
    %107 = vmatprep.subr.mxu0 0.0
    %108 = vmatpush1.msra.mxu0 0.0
    %109 = vmatprep.subr.mxu0 0.0
    %110 = vmatpush1.msra.mxu0 0.0
    %111 = vmatprep.subr.mxu0 0.0
    %112 = vmatpush1.msra.mxu0 0.0
    %113 = vmatprep.subr.mxu0 0.0
    %114 = vmatpush1.msra.mxu0 0.0
    %115 = vmatprep.subr.mxu0 0.0
    %116 = vmatpush1.msra.mxu0 0.0
    %117 = vmatprep.subr.mxu0 0.0
    %118 = vmatpush1.msra.mxu0 0.0
    %119 = vmatprep.subr.mxu0 0.0
    %120 = vmatpush1.msra.mxu0 0.0
    %121 = vmatprep.subr.mxu0 0.0
    %122 = vmatpush1.msra.mxu0 0.0
    %123 = vmatprep.subr.mxu0 0.0
    %124 = vmatpush1.msra.mxu0 0.0
    %125 = vmatprep.subr.mxu0 0.0
    %126 = vmatpush1.msra.mxu0 0.0
    %127 = vmatprep.subr.mxu0 0.0
    %128 = vmatpush1.msra.mxu0 0.0
    %129 = vmatprep.subr.mxu0 0.0
    %130 = vmatpush1.msra.mxu0 0.0
    %131 = vmatprep.subr.mxu0 0.0
    %132 = vmatpush1.msra.mxu0 0.0
    %133 = vmatprep.mubr.f32.mxu0 0.0
    %134 = vmatmul.mubr.f32.gmra.mrb[0].mxu0 %v21
    %v135 = vpop.f32.mrb[0].mxu0
    %v136 = vadd.f32 %v62, %v135
    %v137 = vpop.f32.mrb[0].mxu0
    %v138 = vadd.f32 %v66, %v137
    %139 = vmatprep.mubr.f32.mxu0 0.0
    %140 = vmatmul.mubr.f32.gmra.mrb[0].mxu0 %v22
    %v141 = vpop.f32.mrb[0].mxu0
    %v142 = vadd.f32 %v62, %v141
    %v143 = vpop.f32.mrb[0].mxu0
    %v144 = vadd.f32 %v66, %v143
    %145 = vmatprep.mubr.f32.mxu0 0.0
    %146 = vmatmul.mubr.f32.gmra.mrb[0].mxu0 %v23
    %v147 = vpop.f32.mrb[0].mxu0
    %v148 = vadd.f32 %v62, %v147
    %v149 = vpop.f32.mrb[0].mxu0
    %v150 = vadd.f32 %v66, %v149
    %151 = vmatprep.mubr.f32.mxu0 0.0
    %152 = vmatmul.mubr.f32.gmra.mrb[0].mxu0 %v24
    %v153 = vpop.f32.mrb[0].mxu0
    %v154 = vadd.f32 %v62, %v153
    %v155 = vpop.f32.mrb[0].mxu0
    %v156 = vadd.f32 %v66, %v155
    %157 = vdwg.mxu0
    %v158 = vmax.f32 %v136, 0.0
    %v159 = vmax.f32 %v138, 0.0
    %v160 = vmax.f32 %v142, 0.0
    %v161 = vmax.f32 %v144, 0.0
    %v162 = vmax.f32 %v148, 0.0
    %v163 = vmax.f32 %v150, 0.0
    %v164 = vmax.f32 %v154, 0.0
    %v165 = vmax.f32 %v156, 0.0
    %v166 = vld [vmem:[%s3] sm:$0xff]
    %v167 = vld [vmem:[%s3 + $0x8] sm:$0xff]
    %v168 = vld [vmem:[%s3 + $0x10] sm:$0xff]
    %v169 = vld [vmem:[%s3 + $0x18] sm:$0xff]
    %v170 = vld [vmem:[%s3 + $0x20] sm:$0xff]
    %v171 = vld [vmem:[%s3 + $0x28] sm:$0xff]
    %v172 = vld [vmem:[%s3 + $0x30] sm:$0xff]
    %v173 = vld [vmem:[%s3 + $0x38] sm:$0xff]
    %v174 = vld [vmem:[%s3 + $0x40] sm:$0xff]
    %v175 = vld [vmem:[%s3 + $0x48] sm:$0xff]
    %v176 = vld [vmem:[%s3 + $0x50] sm:$0xff]
    %v177 = vld [vmem:[%s3 + $0x58] sm:$0xff]
    %v178 = vld [vmem:[%s3 + $0x60] sm:$0xff]
    %v179 = vld [vmem:[%s3 + $0x68] sm:$0xff]
    %v180 = vld [vmem:[%s3 + $0x70] sm:$0xff]
    %v181 = vld [vmem:[%s3 + $0x78] sm:$0xff]
    %v182 = vld [vmem:[%s3 + $0x80] sm:$0xff]
    %v183 = vld [vmem:[%s3 + $0x88] sm:$0xff]
    %v184 = vld [vmem:[%s3 + $0x90] sm:$0xff]
    %v185 = vld [vmem:[%s3 + $0x98] sm:$0xff]
    %v186 = vld [vmem:[%s3 + $0xa0] sm:$0xff]
    %v187 = vld [vmem:[%s3 + $0xa8] sm:$0xff]
    %v188 = vld [vmem:[%s3 + $0xb0] sm:$0xff]
    %v189 = vld [vmem:[%s3 + $0xb8] sm:$0xff]
    %v190 = vld [vmem:[%s3 + $0xc0] sm:$0xff]
    %v191 = vld [vmem:[%s3 + $0xc8] sm:$0xff]
    %v192 = vld [vmem:[%s3 + $0xd0] sm:$0xff]
    %v193 = vld [vmem:[%s3 + $0xd8] sm:$0xff]
    %v194 = vld [vmem:[%s3 + $0xe0] sm:$0xff]
    %v195 = vld [vmem:[%s3 + $0xe8] sm:$0xff]
    %v196 = vld [vmem:[%s3 + $0xf0] sm:$0xff]
    %v197 = vld [vmem:[%s3 + $0xf8] sm:$0xff]
    %v198 = vld [vmem:[%s4] sm:$0x1]
    %v200 = vlaneseq
    %v201 = vshrl.u32 %v200, 7
    %v202 = vsub.s32 0, %v201
    %v203 = vrot.slane %v198, %v202
    %205 = vmatprep.subr.mxu0 0.0
    %206 = vmatpush1.msra.mxu0 %v166
    %207 = vmatprep.subr.mxu0 0.0
    %208 = vmatpush1.msra.mxu0 %v167
    %209 = vmatprep.subr.mxu0 0.0
    %210 = vmatpush1.msra.mxu0 %v168
    %211 = vmatprep.subr.mxu0 0.0
    %212 = vmatpush1.msra.mxu0 %v169
    %213 = vmatprep.subr.mxu0 0.0
    %214 = vmatpush1.msra.mxu0 %v170
    %215 = vmatprep.subr.mxu0 0.0
    %216 = vmatpush1.msra.mxu0 %v171
    %217 = vmatprep.subr.mxu0 0.0
    %218 = vmatpush1.msra.mxu0 %v172
    %219 = vmatprep.subr.mxu0 0.0
    %220 = vmatpush1.msra.mxu0 %v173
    %221 = vmatprep.subr.mxu0 0.0
    %222 = vmatpush1.msra.mxu0 %v174
    %223 = vmatprep.subr.mxu0 0.0
    %224 = vmatpush1.msra.mxu0 %v175
    %225 = vmatprep.subr.mxu0 0.0
    %226 = vmatpush1.msra.mxu0 %v176
    %227 = vmatprep.subr.mxu0 0.0
    %228 = vmatpush1.msra.mxu0 %v177
    %229 = vmatprep.subr.mxu0 0.0
    %230 = vmatpush1.msra.mxu0 %v178
    %231 = vmatprep.subr.mxu0 0.0
    %232 = vmatpush1.msra.mxu0 %v179
    %233 = vmatprep.subr.mxu0 0.0
    %234 = vmatpush1.msra.mxu0 %v180
    %235 = vmatprep.subr.mxu0 0.0
    %236 = vmatpush1.msra.mxu0 %v181
    %237 = vmatprep.subr.mxu0 0.0
    %238 = vmatpush1.msra.mxu0 %v182
    %239 = vmatprep.subr.mxu0 0.0
    %240 = vmatpush1.msra.mxu0 %v183
    %241 = vmatprep.subr.mxu0 0.0
    %242 = vmatpush1.msra.mxu0 %v184
    %243 = vmatprep.subr.mxu0 0.0
    %244 = vmatpush1.msra.mxu0 %v185
    %245 = vmatprep.subr.mxu0 0.0
    %246 = vmatpush1.msra.mxu0 %v186
    %247 = vmatprep.subr.mxu0 0.0
    %248 = vmatpush1.msra.mxu0 %v187
    %249 = vmatprep.subr.mxu0 0.0
    %250 = vmatpush1.msra.mxu0 %v188
    %251 = vmatprep.subr.mxu0 0.0
    %252 = vmatpush1.msra.mxu0 %v189
    %253 = vmatprep.subr.mxu0 0.0
    %254 = vmatpush1.msra.mxu0 %v190
    %255 = vmatprep.subr.mxu0 0.0
    %256 = vmatpush1.msra.mxu0 %v191
    %257 = vmatprep.subr.mxu0 0.0
    %258 = vmatpush1.msra.mxu0 %v192
    %259 = vmatprep.subr.mxu0 0.0
    %260 = vmatpush1.msra.mxu0 %v193
    %261 = vmatprep.subr.mxu0 0.0
    %262 = vmatpush1.msra.mxu0 %v194
    %263 = vmatprep.subr.mxu0 0.0
    %264 = vmatpush1.msra.mxu0 %v195
    %265 = vmatprep.subr.mxu0 0.0
    %266 = vmatpush1.msra.mxu0 %v196
    %267 = vmatprep.subr.mxu0 0.0
    %268 = vmatpush1.msra.mxu0 %v197
    %269 = vmatprep.mubr.f32.mxu0 %v159
    %270 = vmatmul.mubr.f32.gmra.mrb[0].mxu0 %v158
    %v271 = vpop.f32.mrb[0].mxu0
    %v272 = vadd.f32 %v203, %v271
    %v273 = vpop.f32.mrb[0].mxu0
    %274 = vmatprep.mubr.f32.mxu0 %v161
    %275 = vmatmul.mubr.f32.gmra.mrb[0].mxu0 %v160
    %v276 = vpop.f32.mrb[0].mxu0
    %v277 = vadd.f32 %v203, %v276
    %v278 = vpop.f32.mrb[0].mxu0
    %279 = vmatprep.mubr.f32.mxu0 %v163
    %280 = vmatmul.mubr.f32.gmra.mrb[0].mxu0 %v162
    %v281 = vpop.f32.mrb[0].mxu0
    %v282 = vadd.f32 %v203, %v281
    %v283 = vpop.f32.mrb[0].mxu0
    %284 = vmatprep.mubr.f32.mxu0 %v165
    %285 = vmatmul.mubr.f32.gmra.mrb[0].mxu0 %v164
    %v286 = vpop.f32.mrb[0].mxu0
    %v287 = vadd.f32 %v203, %v286
    %v288 = vpop.f32.mrb[0].mxu0
    %289 = vdwg.mxu0
    %vm290 = vcmask 261120
    %291 = vst.msk [vmem:[#allocation2] sm:$0xff] %vm290, %v272
    %292 = vst.msk [vmem:[#allocation2 + $0x8] sm:$0xff] %vm290, %v277
    %293 = vst.msk [vmem:[#allocation2 + $0x10] sm:$0xff] %vm290, %v282
    %294 = vst.msk [vmem:[#allocation2 + $0x18] sm:$0xff] %vm290, %v287
    // Predicated region
    $region22: #{tpu_custom_call.1} parent=1 // pred_check
      _
    $region23: #{tpu_custom_call.1} parent=1 // pred_check_branch
      %296 = sbr.rel (0) target = $region25
    $region24: #{tpu_custom_call.1} parent=1 // pred_region
      %s298 = ssub.s32 512, 512
      %299 = vsyncadd [#allocation3], %s298
      %s300 = sshll.u32 [#allocation2], 4
      %s301 = int_to_ptr.vmem [resolvable:$true] %s300
      %306 = dma.vmem_to_hbm [thread:$0]  %s301, 512, %s5, [#allocation3], 128, 128, 8
    $region25: #{tpu_custom_call.1} parent=1 // pred_fallthru
      _
    // Predicated region
    $region26: #{tpu_custom_call.1} parent=1 // pred_check
      _
    $region27: #{tpu_custom_call.1} parent=1 // pred_check_branch
      %308 = sbr.rel (0) target = $region29
    $region28: #{tpu_custom_call.1} parent=1 // pred_region
      %309 = dma.done [#allocation3], 512
    $region29: #{tpu_custom_call.1} parent=1 // pred_fallthru
      _
    %310 = vsyncpa [#allocation3], 1

</llo_original>
